<compile_context>
chip_gen: v5e
topology: v5e:2x2
jax: 0.10.0
libtpu: 0.0.40
codegen_flags: <defaults>
</compile_context>

<pallas_src>
import functools

import jax
import jax.numpy as jnp
from jax.experimental import pallas as pl
from jax.experimental.pallas import tpu as pltpu

LANE = 128  # TPU lane width; W2/b2 are padded to this many MXU columns at init time.


def pgn_kernel(x_ref, w1_ref, b1_ref, w2_ref, b2_ref, o_ref):
    # Hidden layer: x @ W1 + b1, ReLU  (MXU matmul, f32 accumulate; VPU bias/relu).
    h = jnp.dot(x_ref[...], w1_ref[...], preferred_element_type=jnp.float32)
    h = jnp.maximum(h + b1_ref[...], 0.0)
    # Output layer: h @ W2 + b2 (logits, no softmax — matches the PyTorch module).
    # W2/b2 are zero-padded to LANE columns (one full MXU pass, free on v5e's 128x128
    # MXU); only the first n_actions columns are written back.
    out = jnp.dot(h, w2_ref[...], preferred_element_type=jnp.float32) + b2_ref[...]
    o_ref[...] = out[:, : o_ref.shape[1]].astype(o_ref.dtype)


def _round_up(n, m):
    return ((n + m - 1) // m) * m


def prepare_pgn_params(w1, b1, w2, b2):
    """One-time (out of the hot path) padding of layer-2 weights to LANE MXU columns."""
    hidden, n_actions = w2.shape
    w2p = jnp.zeros((hidden, LANE), w2.dtype).at[:, :n_actions].set(w2)
    b2p = jnp.zeros((1, LANE), b2.dtype).at[:, :n_actions].set(b2)
    return (w1, b1, w2p, b2p), n_actions


@functools.partial(jax.jit, static_argnames=("n_actions", "block_b"))
def pgn_forward(x, params, *, n_actions, block_b=512):
    """x: [B, input_size] f32 -> logits [B, n_actions] f32."""
    w1, b1, w2p, b2p = params
    B, in_dim = x.shape

    # Balanced batch tiles: never overshoot B by more than tb-1 (<8 rows of padding
    # per tile beyond load balancing), and tb is always a multiple of 8.
    n_tiles = pl.cdiv(B, block_b)
    tb = _round_up(pl.cdiv(B, n_tiles), 8)
    Bp = n_tiles * tb
    if Bp != B:
        x = jnp.pad(x, ((0, Bp - B), (0, 0)))

    # Weights: full-array blocks with constant index maps -> DMA'd once,
    # VMEM-resident across the whole batch grid.
    const2 = lambda a: pl.BlockSpec(a.shape, lambda i: (0, 0))

    out = pl.pallas_call(
        pgn_kernel,
        out_shape=jax.ShapeDtypeStruct((Bp, n_actions), jnp.float32),
        grid=(n_tiles,),
        in_specs=[
            pl.BlockSpec((tb, in_dim), lambda i: (i, 0)),   # x: pipelined over batch
            const2(w1), const2(b1), const2(w2p), const2(b2p),
        ],
        out_specs=pl.BlockSpec((tb, n_actions), lambda i: (i, 0)),
        compiler_params=pltpu.CompilerParams(
            dimension_semantics=("parallel",),  # v7x: split multi-tile batches across TCs
        ),
    )(x, w1, b1, w2p, b2p)

    return out if Bp == B else out[:B]


def init_pgn_params(key, input_size, hidden, n_actions):
    """Deterministic init mimicking PyTorch nn.Linear default:
    U(-1/sqrt(fan_in), 1/sqrt(fan_in)) for both weight and bias."""
    k1, k2, k3, k4 = jax.random.split(key, 4)
    bound1 = 1.0 / jnp.sqrt(input_size)
    bound2 = 1.0 / jnp.sqrt(hidden)
    # Stored as [in, out] (transposed w.r.t. PyTorch's [out, in]).
    w1 = jax.random.uniform(k1, (input_size, hidden), jnp.float32, -bound1, bound1)
    b1 = jax.random.uniform(k2, (1, hidden), jnp.float32, -bound1, bound1)
    w2 = jax.random.uniform(k3, (hidden, n_actions), jnp.float32, -bound2, bound2)
    b2 = jax.random.uniform(k4, (1, n_actions), jnp.float32, -bound2, bound2)
    return w1, b1, w2, b2


def pgn_reference(x, w1, b1, w2, b2):
    """Pure-JAX reference for correctness checking."""
    h = jnp.maximum(x @ w1 + b1, 0.0)
    return h @ w2 + b2


if __name__ == "__main__":
    # CartPole-v1: observation dim 4, 2 actions, hidden 128 (fixed by the module).
    input_size, hidden, n_actions = 4, 128, 2

    key = jax.random.PRNGKey(0)
    kx, kx2, kp = jax.random.split(key, 3)
    w1, b1, w2, b2 = init_pgn_params(kp, input_size, hidden, n_actions)
    params, n_act = prepare_pgn_params(w1, b1, w2, b2)   # one-time padding, off hot path

    # Small action-selection style batch (single tile, no pad, no slice).
    x_small = jax.random.normal(kx, (8, input_size), jnp.float32)
    logits_small = jax.block_until_ready(pgn_forward(x_small, params, n_actions=n_act))
    ref_small = pgn_reference(x_small, w1, b1, w2, b2)
    assert logits_small.shape == (8, n_actions), logits_small.shape
    assert jnp.allclose(logits_small, ref_small, atol=1e-5, rtol=1e-5), "mismatch (small batch)"

    # Rollout-sized batch with a non-multiple size (exercises balanced tiling:
    # B=300 -> one 304-row tile, 4 padded rows).
    x_big = jax.random.normal(kx2, (300, input_size), jnp.float32)
    logits_big = jax.block_until_ready(pgn_forward(x_big, params, n_actions=n_act))
    ref_big = pgn_reference(x_big, w1, b1, w2, b2)
    assert logits_big.shape == (300, n_actions), logits_big.shape
    assert jnp.allclose(logits_big, ref_big, atol=1e-5, rtol=1e-5), "mismatch (big batch)"

    # Multi-tile batch (exercises the pipelined grid / megacore path).
    x_multi = jax.random.normal(kp, (1100, input_size), jnp.float32)
    logits_multi = jax.block_until_ready(
        pgn_forward(x_multi, params, n_actions=n_act, block_b=512))
    ref_multi = pgn_reference(x_multi, w1, b1, w2, b2)
    assert logits_multi.shape == (1100, n_actions), logits_multi.shape
    assert jnp.allclose(logits_multi, ref_multi, atol=1e-5, rtol=1e-5), "mismatch (multi tile)"

    print("KERNEL_OK")
</pallas_src>

<mosaic_0001>
module attributes {stable_mosaic.version = 11 : i64} {
  func.func @pgn_kernel(%arg0: i32, %arg1: memref<8x4xf32, #tpu.memory_space<vmem>>, %arg2: memref<4x128xf32, #tpu.memory_space<vmem>>, %arg3: memref<1x128xf32, #tpu.memory_space<vmem>>, %arg4: memref<128x128xf32, #tpu.memory_space<vmem>>, %arg5: memref<1x128xf32, #tpu.memory_space<vmem>>, %arg6: memref<8x2xf32, #tpu.memory_space<vmem>>) attributes {dimension_semantics = [#tpu.dimension_semantics<parallel>], iteration_bounds = array<i64: 1>, scalar_prefetch = 0 : i64, scratch_operands = 0 : i64, tpu.core_type = #tpu.core_type<tc>, window_params = [{transform_indices = @transform_0, window_bounds = array<i64: 8, 4>}, {pipeline_mode = #tpu.pipeline_mode<synchronous>, transform_indices = @transform_1, window_bounds = array<i64: 4, 128>}, {pipeline_mode = #tpu.pipeline_mode<synchronous>, transform_indices = @transform_2, window_bounds = array<i64: 1, 128>}, {pipeline_mode = #tpu.pipeline_mode<synchronous>, transform_indices = @transform_3, window_bounds = array<i64: 128, 128>}, {pipeline_mode = #tpu.pipeline_mode<synchronous>, transform_indices = @transform_4, window_bounds = array<i64: 1, 128>}, {transform_indices = @transform_5, window_bounds = array<i64: 8, 2>}]} {
    %c0 = arith.constant 0 : index
    %c0_0 = arith.constant 0 : index
    %0 = vector.load %arg1[%c0, %c0_0] : memref<8x4xf32, #tpu.memory_space<vmem>>, vector<8x4xf32>
    %c0_1 = arith.constant 0 : index
    %c0_2 = arith.constant 0 : index
    %1 = vector.load %arg2[%c0_1, %c0_2] : memref<4x128xf32, #tpu.memory_space<vmem>>, vector<4x128xf32>
    %cst = arith.constant dense<0.000000e+00> : vector<8x128xf32>
    %2 = tpu.matmul %0, %1, %cst {dimension_numbers = #tpu.dot_dimension_numbers<[1], [0], [0], [1], [0, 0, 1, 1], [], []>} : vector<8x4xf32>, vector<4x128xf32>, vector<8x128xf32> -> vector<8x128xf32>
    %c0_3 = arith.constant 0 : index
    %c0_4 = arith.constant 0 : index
    %3 = vector.load %arg3[%c0_3, %c0_4] : memref<1x128xf32, #tpu.memory_space<vmem>>, vector<1x128xf32>
    %4 = vector.broadcast %3 : vector<1x128xf32> to vector<8x128xf32>
    %5 = arith.addf %2, %4 : vector<8x128xf32>
    %cst_5 = arith.constant 0.000000e+00 : f32
    %6 = vector.broadcast %cst_5 : f32 to vector<8x128xf32>
    %7 = arith.maximumf %5, %6 : vector<8x128xf32>
    %c0_6 = arith.constant 0 : index
    %c0_7 = arith.constant 0 : index
    %8 = vector.load %arg4[%c0_6, %c0_7] : memref<128x128xf32, #tpu.memory_space<vmem>>, vector<128x128xf32>
    %cst_8 = arith.constant dense<0.000000e+00> : vector<8x128xf32>
    %9 = tpu.matmul %7, %8, %cst_8 {dimension_numbers = #tpu.dot_dimension_numbers<[1], [0], [0], [1], [0, 0, 1, 1], [], []>} : vector<8x128xf32>, vector<128x128xf32>, vector<8x128xf32> -> vector<8x128xf32>
    %c0_9 = arith.constant 0 : index
    %c0_10 = arith.constant 0 : index
    %10 = vector.load %arg5[%c0_9, %c0_10] : memref<1x128xf32, #tpu.memory_space<vmem>>, vector<1x128xf32>
    %11 = vector.broadcast %10 : vector<1x128xf32> to vector<8x128xf32>
    %12 = arith.addf %9, %11 : vector<8x128xf32>
    %13 = vector.extract_strided_slice %12 {offsets = [0, 0], sizes = [8, 2], strides = [1, 1]} : vector<8x128xf32> to vector<8x2xf32>
    %c0_11 = arith.constant 0 : index
    %c0_12 = arith.constant 0 : index
    %14 = vector.load %arg6[%c0_11, %c0_12] : memref<8x2xf32, #tpu.memory_space<vmem>>, vector<8x2xf32>
    tpu.vector_store %arg6[%c0_11, %c0_12], %13 {strides = array<i32>} : memref<8x2xf32, #tpu.memory_space<vmem>>, vector<8x2xf32>,
    return
  }
  func.func @transform_0(%arg0: i32) -> (i32, i32) {
    %c0_i32 = arith.constant 0 : i32
    %c0_i32_0 = arith.constant 0 : i32
    return %arg0, %c0_i32 : i32, i32
  }
  func.func @transform_1(%arg0: i32) -> (i32, i32) {
    %c0_i32 = arith.constant 0 : i32
    %c0_i32_0 = arith.constant 0 : i32
    %c0_i32_1 = arith.constant 0 : i32
    return %c0_i32, %c0_i32_0 : i32, i32
  }
  func.func @transform_2(%arg0: i32) -> (i32, i32) {
    %c0_i32 = arith.constant 0 : i32
    %c0_i32_0 = arith.constant 0 : i32
    %c0_i32_1 = arith.constant 0 : i32
    return %c0_i32, %c0_i32_0 : i32, i32
  }
  func.func @transform_3(%arg0: i32) -> (i32, i32) {
    %c0_i32 = arith.constant 0 : i32
    %c0_i32_0 = arith.constant 0 : i32
    %c0_i32_1 = arith.constant 0 : i32
    return %c0_i32, %c0_i32_0 : i32, i32
  }
  func.func @transform_4(%arg0: i32) -> (i32, i32) {
    %c0_i32 = arith.constant 0 : i32
    %c0_i32_0 = arith.constant 0 : i32
    %c0_i32_1 = arith.constant 0 : i32
    return %c0_i32, %c0_i32_0 : i32, i32
  }
  func.func @transform_5(%arg0: i32) -> (i32, i32) {
    %c0_i32 = arith.constant 0 : i32
    %c0_i32_0 = arith.constant 0 : i32
    return %arg0, %c0_i32 : i32, i32
  }
}

</mosaic_0001>

<llo_original>
// kernel: pgn_forward.1
$region0: #{pgn_forward.1}
  #allocation0 [shape = 'u32[]', space=smem, size = 0x4, offset = 0x4, fixed_abs, tag = 'smem constant byte address 0x4 - core index']
  #allocation1 [shape = 'u32[72,128]{1,0:T(1,128)}', space=vmem, size = 0x9000, scoped, tag = 'internal scratch']
  %s0 = inlined_call_operand.vmem [shape: f32[8,4], index: 0, kind: input, shape index: {}]
  %s1 = inlined_call_operand.vmem [shape: f32[4,128], index: 1, kind: input, shape index: {}]
  %s2 = inlined_call_operand.vmem [shape: f32[1,128], index: 2, kind: input, shape index: {}]
  %s3 = inlined_call_operand.hbm [shape: f32[128,128], index: 3, kind: input, shape index: {}]
  %s4 = inlined_call_operand.vmem [shape: f32[1,128], index: 4, kind: input, shape index: {}]
  %s5 = inlined_call_operand.vmem [shape: f32[8,2], index: 5, kind: output, shape index: {}]
  %s6 = sld [smem:[#allocation0]]
  $region34: #{pgn_forward.1} parent=0
    _
  %s8 = ssub.s32 1, %s6
  %s9 = scalar_select 0, %s8, %s6
  $region1: #{pgn_forward.1} parent=0
    #allocation2 [shape = 'u8[65536]{0}', space=vmem, size = 0x10000, scoped, tag = 'input window, operand 3, single buffered']
    #allocation3 [shape = 's32[1]{0}', space=sflag, size = 0x4, scoped, tag = 'scoped memory for pgn_forward.1']
    %10 = vsyncpa [#allocation3], 0
    // Predicated region
    $region2: #{pgn_forward.1} parent=1 // pred_check
      _
    $region3: #{pgn_forward.1} parent=1 // pred_check_branch
      %12 = sbr.rel (0) target = $region5
    $region4: #{pgn_forward.1} parent=1 // pred_region
      _
    $region5: #{pgn_forward.1} parent=1 // pred_fallthru
      _
    // Predicated region
    $region6: #{pgn_forward.1} parent=1 // pred_check
      _
    $region7: #{pgn_forward.1} parent=1 // pred_check_branch
      %14 = sbr.rel (0) target = $region9
    $region8: #{pgn_forward.1} parent=1 // pred_region
      _
    $region9: #{pgn_forward.1} parent=1 // pred_fallthru
      _
    // Predicated region
    $region10: #{pgn_forward.1} parent=1 // pred_check
      _
    $region11: #{pgn_forward.1} parent=1 // pred_check_branch
      %16 = sbr.rel (0) target = $region13
    $region12: #{pgn_forward.1} parent=1 // pred_region
      _
    $region13: #{pgn_forward.1} parent=1 // pred_fallthru
      _
    // Predicated region
    $region14: #{pgn_forward.1} parent=1 // pred_check
      _
    $region15: #{pgn_forward.1} parent=1 // pred_check_branch
      %18 = sbr.rel (0) target = $region17
    $region16: #{pgn_forward.1} parent=1 // pred_region
      %20 = vsyncadd [#allocation3], 0
      %s21 = sshll.u32 %s3, 4
      %s22 = int_to_ptr.hbm [resolvable:$true] %s21
      %s23 = sshll.u32 [#allocation2], 4
      %s24 = int_to_ptr.vmem [resolvable:$true] %s23
      %29 = dma.hbm_to_vmem [thread:$0]  %s22, 2048, %s24, [#allocation3], 128, 128, 8
    $region17: #{pgn_forward.1} parent=1 // pred_fallthru
      _
    // Predicated region
    $region18: #{pgn_forward.1} parent=1 // pred_check
      _
    $region19: #{pgn_forward.1} parent=1 // pred_check_branch
      %31 = sbr.rel (0) target = $region21
    $region20: #{pgn_forward.1} parent=1 // pred_region
      _
    $region21: #{pgn_forward.1} parent=1 // pred_fallthru
      _
    // Predicated region
    $region22: #{pgn_forward.1} parent=1 // pred_check
      _
    $region23: #{pgn_forward.1} parent=1 // pred_check_branch
      %33 = sbr.rel (0) target = $region25
    $region24: #{pgn_forward.1} parent=1 // pred_region
      %35 = dma.done [#allocation3], 2048
    $region25: #{pgn_forward.1} parent=1 // pred_fallthru
      _
    %v36 = vld [vmem:[%s0] sm:$0xff]
    %v37 = vld [vmem:[%s1] sm:$0xf]
    %v38 = vld [vmem:[%s2] sm:$0x1]
    %v40 = vperm.slane %v38, 0
    %vm42 = vcmask 31744
    %v44 = vsel %vm42, %v36, 0
    %vm46 = vcmask 1043456
    %v48 = vsel %vm46, %v37, 0
    %50 = vmatpush.msra.mxu0 0.0
    %51 = vmatpush.msra.mxu0 0.0
    %52 = vmatpush.msra.mxu0 0.0
    %53 = vmatpush.msra.mxu0 0.0
    %54 = vmatpush.msra.mxu0 0.0
    %55 = vmatpush.msra.mxu0 0.0
    %56 = vmatpush.msra.mxu0 0.0
    %57 = vmatpush.msra.mxu0 0.0
    %58 = vmatpush.msra.mxu0 0.0
    %59 = vmatpush.msra.mxu0 0.0
    %60 = vmatpush.msra.mxu0 0.0
    %61 = vmatpush.msra.mxu0 0.0
    %62 = vmatpush.msra.mxu0 0.0
    %63 = vmatpush.msra.mxu0 0.0
    %64 = vmatpush.msra.mxu0 0.0
    %65 = vmatpush.msra.mxu0 %v48
    %66 = vmatmul.f32.gmra.mxu0 %v44
    %v67 = vpop.f32.mrf.mxu0
    %v68 = vadd.f32 %v40, %v67
    %69 = vdwg.mxu0
    %v70 = vmax.f32 %v68, 0.0
    %v71 = vld [vmem:[#allocation2] sm:$0xff]
    %v72 = vld [vmem:[#allocation2 + $0x8] sm:$0xff]
    %v73 = vld [vmem:[#allocation2 + $0x10] sm:$0xff]
    %v74 = vld [vmem:[#allocation2 + $0x18] sm:$0xff]
    %v75 = vld [vmem:[#allocation2 + $0x20] sm:$0xff]
    %v76 = vld [vmem:[#allocation2 + $0x28] sm:$0xff]
    %v77 = vld [vmem:[#allocation2 + $0x30] sm:$0xff]
    %v78 = vld [vmem:[#allocation2 + $0x38] sm:$0xff]
    %v79 = vld [vmem:[#allocation2 + $0x40] sm:$0xff]
    %v80 = vld [vmem:[#allocation2 + $0x48] sm:$0xff]
    %v81 = vld [vmem:[#allocation2 + $0x50] sm:$0xff]
    %v82 = vld [vmem:[#allocation2 + $0x58] sm:$0xff]
    %v83 = vld [vmem:[#allocation2 + $0x60] sm:$0xff]
    %v84 = vld [vmem:[#allocation2 + $0x68] sm:$0xff]
    %v85 = vld [vmem:[#allocation2 + $0x70] sm:$0xff]
    %v86 = vld [vmem:[#allocation2 + $0x78] sm:$0xff]
    %v87 = vld [vmem:[%s4] sm:$0x1]
    %v89 = vperm.slane %v87, 0
    %91 = vmatpush.msra.mxu0 %v86
    %92 = vmatpush.msra.mxu0 %v85
    %93 = vmatpush.msra.mxu0 %v84
    %94 = vmatpush.msra.mxu0 %v83
    %95 = vmatpush.msra.mxu0 %v82
    %96 = vmatpush.msra.mxu0 %v81
    %97 = vmatpush.msra.mxu0 %v80
    %98 = vmatpush.msra.mxu0 %v79
    %99 = vmatpush.msra.mxu0 %v78
    %100 = vmatpush.msra.mxu0 %v77
    %101 = vmatpush.msra.mxu0 %v76
    %102 = vmatpush.msra.mxu0 %v75
    %103 = vmatpush.msra.mxu0 %v74
    %104 = vmatpush.msra.mxu0 %v73
    %105 = vmatpush.msra.mxu0 %v72
    %106 = vmatpush.msra.mxu0 %v71
    %107 = vmatmul.f32.gmra.mxu0 %v70
    %v108 = vpop.f32.mrf.mxu0
    %v109 = vadd.f32 %v89, %v108
    %110 = vdwg.mxu0
    %vm111 = vcmask 15360
    %112 = vst.msk [vmem:[%s5] sm:$0xff] %vm111, %v109
    // Predicated region
    $region26: #{pgn_forward.1} parent=1 // pred_check
      _
    $region27: #{pgn_forward.1} parent=1 // pred_check_branch
      %114 = sbr.rel (0) target = $region29
    $region28: #{pgn_forward.1} parent=1 // pred_region
      _
    $region29: #{pgn_forward.1} parent=1 // pred_fallthru
      _
    // Predicated region
    $region30: #{pgn_forward.1} parent=1 // pred_check
      _
    $region31: #{pgn_forward.1} parent=1 // pred_check_branch
      %116 = sbr.rel (0) target = $region33
    $region32: #{pgn_forward.1} parent=1 // pred_region
      _
    $region33: #{pgn_forward.1} parent=1 // pred_fallthru
      _
    %117 = vsyncpa [#allocation3], 1

</llo_original>
